<compile_context>
chip_gen: v7x
topology: tpu7x:2x2x1
jax: 0.10.0
libtpu: 0.0.40
codegen_flags: <defaults>
</compile_context>

<pallas_src>
import functools

import jax
import jax.numpy as jnp
from jax import lax
from jax.experimental import pallas as pl
from jax.experimental.pallas import tpu as pltpu

LANES = 128
SUBLANES = 8
CHUNK_ROWS = 512                 # inner-loop chunk: 512x128 f32 = 256 KiB
TARGET_BLOCK_BYTES = 2 << 20     # ~2 MiB per input per pipeline buffer


def _tensorcores_per_device():
    """Best-effort TC count per device: 2 on dual-core chips, else 1 (safe)."""
    try:
        kind = jax.devices()[0].device_kind.lower()
    except Exception:
        return 1
    if any(tag in kind for tag in ("v7", "v4", "v5p")):
        return 2
    return 1


def _mse_partial_kernel(p_ref, r_ref, out_ref, *, tile_rows, chunk_rows,
                        blocks_per_core, rows_valid, apply_mask):
    c = pl.program_id(0)
    i = pl.program_id(1)

    @pl.when(i == 0)
    def _init():
        out_ref[...] = jnp.zeros_like(out_ref)

    n_chunks = tile_rows // chunk_rows
    groups = chunk_rows // SUBLANES

    def accumulate(mask_rows_left=None):
        # mask_rows_left: scalar count of valid rows from this tile's start;
        # None => unmasked fast path (full tiles stay purely bandwidth-bound).
        if mask_rows_left is not None:
            # Constant chunk-local iota, hoisted out of the chunk loop.
            row_iota = lax.broadcasted_iota(jnp.int32, (chunk_rows, LANES), 0)

        def body(g, acc):
            start = pl.multiple_of(g * chunk_rows, chunk_rows)
            d = (p_ref[pl.ds(start, chunk_rows), :].astype(jnp.float32)
                 - r_ref[pl.ds(start, chunk_rows), :].astype(jnp.float32))
            if mask_rows_left is not None:
                # Mask BEFORE squaring: padded/clamped rows may hold garbage
                # (possibly Inf/NaN) and must contribute exactly zero.
                d = jnp.where(row_iota < (mask_rows_left - g * chunk_rows),
                              d, 0.0)
            sq = d * d
            # Fold the chunk's sublane groups into a single (8,128) vreg:
            # pure VPU adds, no cross-lane XLU reduce in the hot loop.
            return acc + jnp.sum(sq.reshape(groups, SUBLANES, LANES), axis=0)

        acc0 = jnp.zeros((SUBLANES, LANES), jnp.float32)
        acc = lax.fori_loop(0, n_chunks, body, acc0, unroll=True)
        out_ref[...] += acc

    if not apply_mask:
        accumulate()
    else:
        gb = c * blocks_per_core + i              # intended global block idx
        is_boundary = (gb + 1) * tile_rows > rows_valid

        @pl.when(jnp.logical_not(is_boundary))
        def _full_tiles():
            accumulate()

        @pl.when(is_boundary)
        def _boundary_tiles():
            accumulate(mask_rows_left=rows_valid - gb * tile_rows)


def _choose_tile_rows(rows, itemsize, requested):
    if requested is None:
        requested = max(SUBLANES, TARGET_BLOCK_BYTES // (LANES * itemsize))
    rows8 = pl.cdiv(rows, SUBLANES) * SUBLANES
    t = max(SUBLANES, min(int(requested), rows8))
    if t >= CHUNK_ROWS:
        t = (t // CHUNK_ROWS) * CHUNK_ROWS       # multiple of the inner chunk
    else:
        t = pl.cdiv(t, SUBLANES) * SUBLANES      # small input: 8-row aligned
    return t


def mta_regression_loss(pred, real, *, tile_rows=None):
    """Equivalent of MTA_Regression_loss().forward(pred, real) (mean MSE)."""
    assert pred.shape == real.shape, "mse_loss requires matching shapes here"
    n_elems = pred.size
    assert n_elems > 0

    p_flat = pred.reshape(-1)
    r_flat = real.reshape(-1)

    rows = n_elems // LANES
    rem = n_elems - rows * LANES

    # <128-element tail handled in the wrapper (tiny) instead of jnp.pad-ing
    # a full copy of BOTH inputs.
    tail = jnp.float32(0.0)
    if rem:
        tp = p_flat[rows * LANES:].astype(jnp.float32)
        tr = r_flat[rows * LANES:].astype(jnp.float32)
        tail = jnp.sum((tp - tr) ** 2)

    if rows == 0:
        return (tail / jnp.float32(n_elems)).astype(jnp.float32)

    if rem:
        # NOTE: prefix slice still costs one slab copy for misaligned inputs;
        # numel % 128 == 0 (the common case) is fully zero-copy.
        p_flat = p_flat[:rows * LANES]
        r_flat = r_flat[:rows * LANES]
    p2d = p_flat.reshape(rows, LANES)
    r2d = r_flat.reshape(rows, LANES)

    itemsize = max(jnp.dtype(pred.dtype).itemsize,
                   jnp.dtype(real.dtype).itemsize)
    tile_rows = _choose_tile_rows(rows, itemsize, tile_rows)
    chunk_rows = min(CHUNK_ROWS, tile_rows)
    assert tile_rows % chunk_rows == 0 and chunk_rows % SUBLANES == 0

    blocks_total = pl.cdiv(rows, tile_rows)
    num_splits = max(1, min(_tensorcores_per_device(), blocks_total))
    blocks_per_core = pl.cdiv(blocks_total, num_splits)
    covered_rows = num_splits * blocks_per_core * tile_rows
    apply_mask = covered_rows != rows            # partial / clamped tiles exist
    last_block = blocks_total - 1

    if apply_mask:
        def in_index_map(c, i):
            # Clamp so a fully out-of-range tile re-reads a valid tile; the
            # in-kernel intent mask zeroes its contribution.
            return (jnp.minimum(c * blocks_per_core + i, last_block), 0)
    else:
        def in_index_map(c, i):
            return (c * blocks_per_core + i, 0)

    kernel = functools.partial(
        _mse_partial_kernel,
        tile_rows=tile_rows,
        chunk_rows=chunk_rows,
        blocks_per_core=blocks_per_core,
        rows_valid=rows,
        apply_mask=apply_mask,
    )

    partials = pl.pallas_call(
        kernel,
        out_shape=jax.ShapeDtypeStruct(
            (num_splits, SUBLANES, LANES), jnp.float32),
        grid_spec=pltpu.PrefetchScalarGridSpec(
            num_scalar_prefetch=0,
            grid=(num_splits, blocks_per_core),
            in_specs=[
                pl.BlockSpec((tile_rows, LANES), in_index_map),
                pl.BlockSpec((tile_rows, LANES), in_index_map),
            ],
            out_specs=pl.BlockSpec(
                (None, SUBLANES, LANES), lambda c, i: (c, 0, 0)),
        ),
        compiler_params=pltpu.CompilerParams(
            dimension_semantics=("parallel", "arbitrary"),
        ),
    )(p2d, r2d)

    # Tiny final reduce + mean over the true element count.
    total = jnp.sum(partials) + tail
    return (total / jnp.float32(n_elems)).astype(jnp.float32)


if __name__ == "__main__":
    key = jax.random.PRNGKey(0)
    k1, k2, k3, k4, k5, k6 = jax.random.split(key, 6)

    # 1) Shapes consistent with a regression head output (batch, C, H, W).
    pred = jax.random.normal(k1, (2, 4, 16, 16), dtype=jnp.float32)
    real = jax.random.normal(k2, (2, 4, 16, 16), dtype=jnp.float32)
    loss = mta_regression_loss(pred, real)
    jax.block_until_ready(loss)
    ref = jnp.mean((pred - real) ** 2)
    assert jnp.allclose(loss, ref, rtol=1e-5, atol=1e-6), (loss, ref)

    # 2) Non-128-aligned size exercising the wrapper-side tail path.
    pred2 = jax.random.normal(k3, (2, 3, 50), dtype=jnp.float32)
    real2 = jax.random.normal(k4, (2, 3, 50), dtype=jnp.float32)
    loss2 = mta_regression_loss(pred2, real2)
    jax.block_until_ready(loss2)
    ref2 = jnp.mean((pred2 - real2) ** 2)
    assert jnp.allclose(loss2, ref2, rtol=1e-5, atol=1e-6), (loss2, ref2)

    # 3) Larger (still sub-MB) case exercising multi-block grid, the unrolled
    #    chunk loop, and the boundary-only mask path.
    pred3 = jax.random.normal(k5, (2, 5, 120, 120), dtype=jnp.float32)
    real3 = jax.random.normal(k6, (2, 5, 120, 120), dtype=jnp.float32)
    loss3 = mta_regression_loss(pred3, real3)
    jax.block_until_ready(loss3)
    ref3 = jnp.mean((pred3 - real3) ** 2)
    assert jnp.allclose(loss3, ref3, rtol=1e-4, atol=1e-6), (loss3, ref3)

    print("KERNEL_OK")
</pallas_src>

<mosaic_0001>
module attributes {stable_mosaic.version = 11 : i64} {
  func.func @_mse_partial_kernel(%arg0: i32, %arg1: i32, %arg2: memref<16x128xf32, #tpu.memory_space<vmem>>, %arg3: memref<16x128xf32, #tpu.memory_space<vmem>>, %arg4: memref<1x8x128xf32, #tpu.memory_space<vmem>>) attributes {dimension_semantics = [#tpu.dimension_semantics<parallel>, #tpu.dimension_semantics<arbitrary>], iteration_bounds = array<i64: 1, 1>, scalar_prefetch = 0 : i64, scratch_operands = 0 : i64, tpu.core_type = #tpu.core_type<tc>, window_params = [{transform_indices = @transform_0, window_bounds = array<i64: 16, 128>}, {transform_indices = @transform_1, window_bounds = array<i64: 16, 128>}, {transform_indices = @transform_2, window_bounds = array<i64: 1, 8, 128>}]} {
    %c0_i32 = arith.constant 0 : i32
    %0 = arith.cmpi eq, %arg1, %c0_i32 : i32
    %1 = arith.extui %0 : i1 to i32
    %c0_i32_0 = arith.constant 0 : i32
    %2 = arith.cmpi ne, %1, %c0_i32_0 : i32
    scf.if %2 {
      %cst_10 = arith.constant 0.000000e+00 : f32
      %21 = vector.broadcast %cst_10 : f32 to vector<8x128xf32>
      %c0_11 = arith.constant 0 : index
      %c0_12 = arith.constant 0 : index
      %c0_13 = arith.constant 0 : index
      %22 = vector.load %arg4[%c0_11, %c0_12, %c0_13] : memref<1x8x128xf32, #tpu.memory_space<vmem>>, vector<1x8x128xf32>
      %23 = vector.shape_cast %22 : vector<1x8x128xf32> to vector<8x128xf32>
      %24 = vector.shape_cast %21 : vector<8x128xf32> to vector<1x8x128xf32>
      tpu.vector_store %arg4[%c0_11, %c0_12, %c0_13], %24 {strides = array<i32>} : memref<1x8x128xf32, #tpu.memory_space<vmem>>, vector<1x8x128xf32>,
    } else {
    }
    %cst = arith.constant 0.000000e+00 : f32
    %3 = vector.broadcast %cst : f32 to vector<8x128xf32>
    %c0_i32_1 = arith.constant 0 : i32
    %c16_i32 = arith.constant 16 : i32
    %4 = arith.muli %c0_i32_1, %c16_i32 : i32
    %5 = tpu.assume_multiple %4, 16 : i32
    %6 = arith.index_cast %5 : i32 to index
    %c0 = arith.constant 0 : index
    %7 = vector.load %arg2[%6, %c0] : memref<16x128xf32, #tpu.memory_space<vmem>>, vector<16x128xf32>
    %8 = arith.index_cast %5 : i32 to index
    %c0_2 = arith.constant 0 : index
    %9 = vector.load %arg3[%8, %c0_2] : memref<16x128xf32, #tpu.memory_space<vmem>>, vector<16x128xf32>
    %10 = arith.subf %7, %9 : vector<16x128xf32>
    %11 = arith.mulf %10, %10 : vector<16x128xf32>
    %12 = vector.shape_cast %11 : vector<16x128xf32> to vector<2x8x128xf32>
    %cst_3 = arith.constant dense<0.000000e+00> : vector<8x128xf32>
    %13 = vector.multi_reduction <add>, %12, %cst_3 [0] : vector<2x8x128xf32> to vector<8x128xf32>
    %14 = arith.addf %3, %13 : vector<8x128xf32>
    %c1_i32 = arith.constant 1 : i32
    %c0_4 = arith.constant 0 : index
    %c0_5 = arith.constant 0 : index
    %c0_6 = arith.constant 0 : index
    %15 = vector.load %arg4[%c0_4, %c0_5, %c0_6] : memref<1x8x128xf32, #tpu.memory_space<vmem>>, vector<1x8x128xf32>
    %16 = vector.shape_cast %15 : vector<1x8x128xf32> to vector<8x128xf32>
    %17 = arith.addf %16, %14 : vector<8x128xf32>
    %c0_7 = arith.constant 0 : index
    %c0_8 = arith.constant 0 : index
    %c0_9 = arith.constant 0 : index
    %18 = vector.load %arg4[%c0_7, %c0_8, %c0_9] : memref<1x8x128xf32, #tpu.memory_space<vmem>>, vector<1x8x128xf32>
    %19 = vector.shape_cast %18 : vector<1x8x128xf32> to vector<8x128xf32>
    %20 = vector.shape_cast %17 : vector<8x128xf32> to vector<1x8x128xf32>
    tpu.vector_store %arg4[%c0_7, %c0_8, %c0_9], %20 {strides = array<i32>} : memref<1x8x128xf32, #tpu.memory_space<vmem>>, vector<1x8x128xf32>,
    return
  }
  func.func @transform_0(%arg0: i32, %arg1: i32) -> (i32, i32) {
    %c1_i32 = arith.constant 1 : i32
    %0 = arith.muli %arg0, %c1_i32 : i32
    %1 = arith.addi %0, %arg1 : i32
    %c0_i32 = arith.constant 0 : i32
    %c0_i32_0 = arith.constant 0 : i32
    return %1, %c0_i32 : i32, i32
  }
  func.func @transform_1(%arg0: i32, %arg1: i32) -> (i32, i32) {
    %c1_i32 = arith.constant 1 : i32
    %0 = arith.muli %arg0, %c1_i32 : i32
    %1 = arith.addi %0, %arg1 : i32
    %c0_i32 = arith.constant 0 : i32
    %c0_i32_0 = arith.constant 0 : i32
    return %1, %c0_i32 : i32, i32
  }
  func.func @transform_2(%arg0: i32, %arg1: i32) -> (i32, i32, i32) {
    %c0_i32 = arith.constant 0 : i32
    %c0_i32_0 = arith.constant 0 : i32
    %c0_i32_1 = arith.constant 0 : i32
    return %arg0, %c0_i32, %c0_i32_0 : i32, i32, i32
  }
}

</mosaic_0001>

<llo_original>
// kernel: tpu_custom_call.1
$region0: #{tpu_custom_call.1}
  #allocation0 [shape = 'u32[]', space=smem, size = 0x4, offset = 0x4, fixed_abs, tag = 'smem constant byte address 0x4 - core index']
  #allocation1 [shape = 'u32[144,128]{1,0:T(1,128)}', space=vmem, size = 0x12000, scoped, tag = 'internal scratch']
  %s0 = inlined_call_operand.hbm [shape: f32[16,128], index: 0, kind: input, shape index: {}]
  %s1 = inlined_call_operand.hbm [shape: f32[16,128], index: 1, kind: input, shape index: {}]
  %s2 = inlined_call_operand.hbm [shape: f32[1,8,128], index: 2, kind: output, shape index: {}]
  %s3 = sld [smem:[#allocation0]]
  $region30: #{tpu_custom_call.1} parent=0
    _
  %s5 = ssub.s32 1, %s3
  %s6 = scalar_select 0, %s5, %s3
  $region1: #{tpu_custom_call.1} parent=0
    #allocation2 [shape = 'u8[8192]{0}', space=vmem, size = 0x2000, scoped, tag = 'input window, operand 0, single buffered']
    #allocation3 [shape = 's32[1]{0}', space=sflag, size = 0x4, scoped, tag = 'scoped memory for tpu_custom_call.1']
    #allocation4 [shape = 's32[1]{0}', space=sflag, size = 0x4, scoped, tag = 'scoped memory for tpu_custom_call.1']
    #allocation5 [shape = 'u8[8192]{0}', space=vmem, size = 0x2000, scoped, tag = 'input window, operand 1, single buffered']
    #allocation6 [shape = 's32[1]{0}', space=sflag, size = 0x4, scoped, tag = 'scoped memory for tpu_custom_call.1']
    #allocation7 [shape = 'u8[4096]{0}', space=vmem, size = 0x1000, scoped, tag = 'output window, operand 0, single buffered']
    %7 = vsyncpa [#allocation3], 0
    %8 = vsyncpa [#allocation6], 0
    %9 = vsyncpa [#allocation4], 0
    // Predicated region
    $region2: #{tpu_custom_call.1} parent=1 // pred_check
      _
    $region3: #{tpu_custom_call.1} parent=1 // pred_check_branch
      %11 = sbr.rel (0) target = $region5
    $region4: #{tpu_custom_call.1} parent=1 // pred_region
      %s12 = sadd.s32 0, 0
      %s13 = smul.u32 2, %s12
      %s15 = ssub.s32 256, 256
      %16 = vsyncadd [#allocation3], %s15
      %s17 = smul.addr %s13, 128
      %s18 = scalar_lea.hbm %s0, %s17
      %s19 = sshll.u32 [#allocation2], 4
      %s20 = int_to_ptr.vmem [resolvable:$true] %s19
      %25 = dma.hbm_to_vmem [thread:$0]  %s18, 256, %s20, [#allocation3], 128, 128, 8
    $region5: #{tpu_custom_call.1} parent=1 // pred_fallthru
      _
    // Predicated region
    $region6: #{tpu_custom_call.1} parent=1 // pred_check
      _
    $region7: #{tpu_custom_call.1} parent=1 // pred_check_branch
      %27 = sbr.rel (0) target = $region9
    $region8: #{tpu_custom_call.1} parent=1 // pred_region
      %s28 = sadd.s32 0, 0
      %s29 = smul.u32 2, %s28
      %s31 = ssub.s32 256, 256
      %32 = vsyncadd [#allocation6], %s31
      %s33 = smul.addr %s29, 128
      %s34 = scalar_lea.hbm %s1, %s33
      %s35 = sshll.u32 [#allocation5], 4
      %s36 = int_to_ptr.vmem [resolvable:$true] %s35
      %41 = dma.hbm_to_vmem [thread:$0]  %s34, 256, %s36, [#allocation6], 128, 128, 8
    $region9: #{tpu_custom_call.1} parent=1 // pred_fallthru
      _
    // Predicated region
    $region10: #{tpu_custom_call.1} parent=1 // pred_check
      _
    $region11: #{tpu_custom_call.1} parent=1 // pred_check_branch
      %43 = sbr.rel (0) target = $region13
    $region12: #{tpu_custom_call.1} parent=1 // pred_region
      %44 = dma.done [#allocation3], 256
    $region13: #{tpu_custom_call.1} parent=1 // pred_fallthru
      _
    // Predicated region
    $region14: #{tpu_custom_call.1} parent=1 // pred_check
      _
    $region15: #{tpu_custom_call.1} parent=1 // pred_check_branch
      %46 = sbr.rel (0) target = $region17
    $region16: #{tpu_custom_call.1} parent=1 // pred_region
      %47 = dma.done [#allocation6], 256
    $region17: #{tpu_custom_call.1} parent=1 // pred_fallthru
      _
    %s48 = sadd.s32 0, 0
    %s49 = smul.u32 2, %s48
    %s50 = sadd.s32 0, 0
    %s51 = smul.u32 2, %s50
    %p52 = scmp.eq.s32.totalorder 0, 0
    // Predicated region
    $region18: #{tpu_custom_call.1} parent=1 // pred_check
      %p53 = pneg %p52
    $region19: #{tpu_custom_call.1} parent=1 // pred_check_branch
      %55 = sbr.rel (%p53) target = $region21
    $region20: #{tpu_custom_call.1} parent=1 // pred_region
      %56 = vst [vmem:[#allocation7] sm:$0xff] 0.0
    $region21: #{tpu_custom_call.1} parent=1 // pred_fallthru
      _
    %v57 = vld [vmem:[#allocation2] sm:$0xff]
    %v58 = vld [vmem:[#allocation2 + $0x8] sm:$0xff]
    %v59 = vld [vmem:[#allocation5] sm:$0xff]
    %v60 = vld [vmem:[#allocation5 + $0x8] sm:$0xff]
    %v61 = vsub.f32 %v57, %v59
    %v62 = vsub.f32 %v58, %v60
    %v63 = vmul.f32 %v61, %v61
    %v64 = vmul.f32 %v62, %v62
    %v65 = vadd.f32 %v63, %v64
    %v66 = vadd.f32 %v65, 0.0
    %v67 = vld [vmem:[#allocation7] sm:$0xff]
    %v68 = vadd.f32 %v67, %v66
    %69 = vst [vmem:[#allocation7] sm:$0xff] %v68
    // Predicated region
    $region22: #{tpu_custom_call.1} parent=1 // pred_check
      _
    $region23: #{tpu_custom_call.1} parent=1 // pred_check_branch
      %71 = sbr.rel (0) target = $region25
    $region24: #{tpu_custom_call.1} parent=1 // pred_region
      %s73 = ssub.s32 128, 128
      %74 = vsyncadd [#allocation4], %s73
      %s76 = sshll.u32 [#allocation7], 4
      %s77 = int_to_ptr.vmem [resolvable:$true] %s76
      %79 = dma.vmem_to_hbm [thread:$0]  %s77, 128, %s2, [#allocation4]
    $region25: #{tpu_custom_call.1} parent=1 // pred_fallthru
      _
    // Predicated region
    $region26: #{tpu_custom_call.1} parent=1 // pred_check
      _
    $region27: #{tpu_custom_call.1} parent=1 // pred_check_branch
      %81 = sbr.rel (0) target = $region29
    $region28: #{tpu_custom_call.1} parent=1 // pred_region
      %82 = dma.done [#allocation4], 128
    $region29: #{tpu_custom_call.1} parent=1 // pred_fallthru
      _
    %83 = vsyncpa [#allocation3], 1
    %84 = vsyncpa [#allocation6], 1
    %85 = vsyncpa [#allocation4], 1

</llo_original>
